<compile_context>
chip_gen: v7x
topology: tpu7x:2x2x1
jax: 0.10.0
libtpu: 0.0.40
codegen_flags: <defaults>
</compile_context>

<pallas_src>
import functools

import jax
import jax.numpy as jnp
from jax.experimental import pallas as pl
from jax.experimental.pallas import tpu as pltpu


def _fused_column_embedding_kernel(*refs, n_layers, K, L, pad_lo, cins, couts,
                                   acts, compute_dtype):
    """Runs the whole ConvBlock chain for one batch tile, activations in VMEM.

    refs layout:
      refs[0]                 : x tile       (Bt, L, cins[0])
      refs[1 : 1+2*n_layers]  : per layer    w: (K, cin, cout), b: (1, cout)
      refs[1+2*n_layers]      : output tile  (Bt, L, couts[-1])
      refs[2+2*n_layers :]    : h0, h1 ping-pong scratch (Bt, L+K-1, cmax) f32
    """
    x_ref = refs[0]
    wb_refs = refs[1:1 + 2 * n_layers]
    o_ref = refs[1 + 2 * n_layers]
    h0, h1 = refs[2 + 2 * n_layers:]

    Bt = x_ref.shape[0]
    cmax = h0.shape[-1]
    pad_hi = K - 1 - pad_lo

    # Zero ONLY the halo rows ('same' padding).  Layers never write halo rows, so
    # one zeroing per grid step suffices; body rows are overwritten every layer,
    # and each layer reads only its own cin channels (exactly the ones written by
    # the previous layer), so no full-buffer zeroing is needed.
    if pad_lo > 0:
        zlo = jnp.zeros((Bt, pad_lo, cmax), h0.dtype)
        h0[:, :pad_lo, :] = zlo
        h1[:, :pad_lo, :] = zlo
    if pad_hi > 0:
        zhi = jnp.zeros((Bt, pad_hi, cmax), h0.dtype)
        h0[:, pad_lo + L:, :] = zhi
        h1[:, pad_lo + L:, :] = zhi

    # Stage the input tile into the padded scratch ('same' padding happens here).
    h0[:, pad_lo:pad_lo + L, :cins[0]] = x_ref[...].astype(h0.dtype)

    src, dst = h0, h1
    for li in range(n_layers):
        cin = cins[li]
        cout = couts[li]
        w_ref = wb_refs[2 * li]
        b_ref = wb_refs[2 * li + 1]

        # K accumulating MXU matmuls on the raw channel widths
        # (no im2col concat, no channel zero padding).
        acc = None
        for k in range(K):
            lhs = src[:, k:k + L, :cin].reshape(Bt * L, cin).astype(compute_dtype)
            part = jnp.dot(lhs, w_ref[k], preferred_element_type=jnp.float32)
            acc = part if acc is None else acc + part

        acc = acc + b_ref[...]                       # (1, cout) broadcasts over M
        if acts[li]:
            acc = jnp.maximum(acc, 0.0)

        if li == n_layers - 1:
            o_ref[...] = acc.reshape(Bt, L, cout).astype(o_ref.dtype)
        else:
            dst[:, pad_lo:pad_lo + L, :cout] = (
                acc.reshape(Bt, L, cout).astype(dst.dtype))
            src, dst = dst, src


def _padded_vmem_bytes(shape, dtype):
    """VMEM footprint of one buffer: last dim padded to 128 lanes, second-to-last
    padded to the dtype's sublane tile (8 words of 32 bits)."""
    itemsize = jnp.dtype(dtype).itemsize
    sublane = 8 * max(1, 4 // itemsize)
    lead = 1
    for s in shape[:-2]:
        lead *= int(s)
    s2 = int(shape[-2]) if len(shape) >= 2 else 1
    s1 = int(shape[-1])
    s2p = -(-s2 // sublane) * sublane
    s1p = -(-s1 // 128) * 128
    return lead * s2p * s1p * itemsize


def prepare_column_embedding_params(params, compute_dtype=jnp.bfloat16):
    """One-time parameter prep, hoisted out of the forward pass.

    `params`: list of (w, b, activation) with w: (K, Cin, Cout) (= PyTorch Conv1d
    weight.permute(2, 1, 0)), b: (Cout,).  Returns weights cast to the MXU input
    dtype and biases reshaped to (1, Cout) float32.
    """
    prepared = []
    for (w, b, act) in params:
        prepared.append((jnp.asarray(w, compute_dtype),
                         jnp.asarray(b, jnp.float32).reshape(1, -1),
                         bool(act)))
    return prepared


def column_embedding_forward(x, prepared_params, *, block_b=None):
    """x: [B, L, input_size] (features last) -> [B, L, output_size].

    `prepared_params` comes from prepare_column_embedding_params(); the weight
    dtype of the first layer defines the MXU compute dtype (bf16 by default,
    float32 for bit-closer numerics).
    """
    B, L, _ = x.shape
    n_layers = len(prepared_params)
    K = int(prepared_params[0][0].shape[0])
    # PyTorch 'same' padding for stride 1: left = (K-1)//2, right = K//2.
    pad_lo = (K - 1) // 2
    Lp = L + K - 1

    cins = tuple(int(w.shape[1]) for (w, _, _) in prepared_params)
    couts = tuple(int(w.shape[2]) for (w, _, _) in prepared_params)
    acts = tuple(bool(a) for (_, _, a) in prepared_params)
    compute_dtype = prepared_params[0][0].dtype
    cmax = max(cins)                       # widest activation held in scratch
    scratch_dtype = jnp.float32            # f32 scratch: safe misaligned halo I/O

    def io_scratch_bytes(bt):
        return (2 * _padded_vmem_bytes((bt, Lp, cmax), scratch_dtype)      # ping-pong
                + 2 * _padded_vmem_bytes((bt, L, cins[0]), x.dtype)        # in (dbl-buf)
                + 2 * _padded_vmem_bytes((bt, L, couts[-1]), x.dtype))     # out (dbl-buf)

    # Batch-tile selection: target Bt*L ~ 1024 matmul rows, bounded by a VMEM
    # budget that fits v7x's 64 MiB; prefer >=2 grid steps (when the batch allows
    # and M stays >= 256) so the "parallel" axis shards across two TensorCores.
    if block_b is None:
        budget = 40 * 1024 * 1024
        target_rows = 1024
        divisors = [d for d in range(1, B + 1) if B % d == 0]
        feasible = [d for d in divisors if io_scratch_bytes(d) <= budget] or [1]
        under = [d for d in feasible if d * L <= target_rows]
        block_b = max(under) if under else min(feasible)
        if B // block_b < 2:
            split = [d for d in feasible if B // d >= 2 and d * L >= 256]
            if split:
                block_b = max(split)
    Bt = block_b
    assert B % Bt == 0, (B, Bt)

    flat_inputs = [x]
    in_specs = [pl.BlockSpec((Bt, L, cins[0]), lambda i: (i, 0, 0))]
    w_bytes = 0
    for (w, b, _) in prepared_params:
        flat_inputs += [w, b]
        in_specs += [pl.BlockSpec(tuple(w.shape), lambda i: (0, 0, 0)),
                     pl.BlockSpec(tuple(b.shape), lambda i: (0, 0))]
        w_bytes += 2 * (_padded_vmem_bytes(w.shape, w.dtype)
                        + _padded_vmem_bytes(b.shape, b.dtype))

    # Recompute the scoped-VMEM limit from actual (padded) buffer sizes.
    vmem_limit = int(max(32 * 1024 * 1024,
                         io_scratch_bytes(Bt) + w_bytes + (4 << 20)))

    kernel = functools.partial(
        _fused_column_embedding_kernel,
        n_layers=n_layers, K=K, L=L, pad_lo=pad_lo,
        cins=cins, couts=couts, acts=acts, compute_dtype=compute_dtype)

    return pl.pallas_call(
        kernel,
        out_shape=jax.ShapeDtypeStruct((B, L, couts[-1]), x.dtype),
        grid=(B // Bt,),
        in_specs=in_specs,
        out_specs=pl.BlockSpec((Bt, L, couts[-1]), lambda i: (i, 0, 0)),
        scratch_shapes=[pltpu.VMEM((Bt, Lp, cmax), scratch_dtype),
                        pltpu.VMEM((Bt, Lp, cmax), scratch_dtype)],
        compiler_params=pltpu.CompilerParams(
            dimension_semantics=("parallel",),
            vmem_limit_bytes=vmem_limit,
        ),
    )(*flat_inputs)


def init_column_embedding_params(key, n_blocks, input_size, hidden_size,
                                 output_size, kernel_size):
    """Parameters in (K, Cin, Cout) layout (= PyTorch Conv1d weight.permute(2,1,0))."""
    sizes = [(input_size, hidden_size, True)]
    for _ in range(n_blocks - 2):
        sizes.append((hidden_size, hidden_size, True))
    sizes.append((hidden_size, output_size, False))

    params = []
    for (cin, cout, act) in sizes:
        key, kw, kb = jax.random.split(key, 3)
        fan_in = cin * kernel_size
        bound = 1.0 / (fan_in ** 0.5)
        w = jax.random.uniform(kw, (kernel_size, cin, cout), jnp.float32,
                               minval=-bound, maxval=bound)
        b = jax.random.uniform(kb, (cout,), jnp.float32,
                               minval=-bound, maxval=bound)
        params.append((w, b, act))
    return params


def _reference_forward(x, params):
    """Pure-JAX f32 reference of the assumed ConvBlock chain (for sanity check)."""
    _, L, _ = x.shape
    h = x.astype(jnp.float32)
    for (w, b, act) in params:
        K = w.shape[0]
        pad_lo = (K - 1) // 2
        xp = jnp.pad(h, ((0, 0), (pad_lo, K - 1 - pad_lo), (0, 0)))
        y = b[None, None, :] + sum(
            jnp.einsum('blc,cd->bld', xp[:, k:k + L, :], w[k]) for k in range(K))
        h = jnp.maximum(y, 0.0) if act else y
    return h


if __name__ == "__main__":
    # Module hyper-parameters (small, consistent with the forward; one_d=True path).
    n_blocks = 3
    input_size = 4
    hidden_size = 32
    output_size = 8
    kernel_size = 3
    # TODO(synk): ConvBlock source not provided; assumed Conv1d(padding='same',
    #             stride=1) + optional ReLU, and only the one_d=True path is implemented.

    key = jax.random.PRNGKey(0)
    key, kx = jax.random.split(key)

    B, L = 2, 16
    x = jax.random.normal(kx, (B, L, input_size), dtype=jnp.float32)

    params = init_column_embedding_params(
        key, n_blocks, input_size, hidden_size, output_size, kernel_size)
    ref = _reference_forward(x, params)

    # Default bf16 MXU path.
    prep_bf16 = prepare_column_embedding_params(params, jnp.bfloat16)
    out = jax.block_until_ready(column_embedding_forward(x, prep_bf16))
    assert out.shape == (B, L, output_size), out.shape
    err_bf16 = float(jnp.max(jnp.abs(out.astype(jnp.float32) - ref)))
    assert err_bf16 < 1e-1, err_bf16

    # f32 compute path with a tighter tolerance (catches layout/indexing bugs).
    prep_f32 = prepare_column_embedding_params(params, jnp.float32)
    out32 = jax.block_until_ready(column_embedding_forward(x, prep_f32))
    err_f32 = float(jnp.max(jnp.abs(out32 - ref)))
    assert err_f32 < 2e-2, err_f32

    print("KERNEL_OK")
</pallas_src>

<mosaic_0001>
module attributes {stable_mosaic.version = 11 : i64} {
  func.func @_fused_column_embedding_kernel(%arg0: i32, %arg1: memref<2x16x4xf32, #tpu.memory_space<vmem>>, %arg2: memref<3x4x32xbf16, #tpu.memory_space<vmem>>, %arg3: memref<1x32xf32, #tpu.memory_space<vmem>>, %arg4: memref<3x32x32xbf16, #tpu.memory_space<vmem>>, %arg5: memref<1x32xf32, #tpu.memory_space<vmem>>, %arg6: memref<3x32x8xbf16, #tpu.memory_space<vmem>>, %arg7: memref<1x8xf32, #tpu.memory_space<vmem>>, %arg8: memref<2x16x8xf32, #tpu.memory_space<vmem>>, %arg9: memref<2x18x32xf32, #tpu.memory_space<vmem>>, %arg10: memref<2x18x32xf32, #tpu.memory_space<vmem>>) attributes {dimension_semantics = [#tpu.dimension_semantics<parallel>], iteration_bounds = array<i64: 1>, scalar_prefetch = 0 : i64, scratch_operands = 2 : i64, tpu.core_type = #tpu.core_type<tc>, window_params = [{transform_indices = @transform_0, window_bounds = array<i64: 2, 16, 4>}, {pipeline_mode = #tpu.pipeline_mode<synchronous>, transform_indices = @transform_1, window_bounds = array<i64: 3, 4, 32>}, {pipeline_mode = #tpu.pipeline_mode<synchronous>, transform_indices = @transform_2, window_bounds = array<i64: 1, 32>}, {pipeline_mode = #tpu.pipeline_mode<synchronous>, transform_indices = @transform_3, window_bounds = array<i64: 3, 32, 32>}, {pipeline_mode = #tpu.pipeline_mode<synchronous>, transform_indices = @transform_4, window_bounds = array<i64: 1, 32>}, {pipeline_mode = #tpu.pipeline_mode<synchronous>, transform_indices = @transform_5, window_bounds = array<i64: 3, 32, 8>}, {pipeline_mode = #tpu.pipeline_mode<synchronous>, transform_indices = @transform_6, window_bounds = array<i64: 1, 8>}, {transform_indices = @transform_7, window_bounds = array<i64: 2, 16, 8>}]} {
    %cst = arith.constant 0.000000e+00 : f32
    %0 = vector.broadcast %cst : f32 to vector<2x1x32xf32>
    %c0 = arith.constant 0 : index
    %c0_0 = arith.constant 0 : index
    %c0_1 = arith.constant 0 : index
    %1 = vector.load %arg9[%c0, %c0_0, %c0_1] : memref<2x18x32xf32, #tpu.memory_space<vmem>>, vector<2x1x32xf32>
    tpu.vector_store %arg9[%c0, %c0_0, %c0_1], %0 {strides = array<i32>} : memref<2x18x32xf32, #tpu.memory_space<vmem>>, vector<2x1x32xf32>,
    %c0_2 = arith.constant 0 : index
    %c0_3 = arith.constant 0 : index
    %c0_4 = arith.constant 0 : index
    %2 = vector.load %arg10[%c0_2, %c0_3, %c0_4] : memref<2x18x32xf32, #tpu.memory_space<vmem>>, vector<2x1x32xf32>
    tpu.vector_store %arg10[%c0_2, %c0_3, %c0_4], %0 {strides = array<i32>} : memref<2x18x32xf32, #tpu.memory_space<vmem>>, vector<2x1x32xf32>,
    %cst_5 = arith.constant 0.000000e+00 : f32
    %3 = vector.broadcast %cst_5 : f32 to vector<2x1x32xf32>
    %c0_6 = arith.constant 0 : index
    %c17 = arith.constant 17 : index
    %c0_7 = arith.constant 0 : index
    %4 = vector.load %arg9[%c0_6, %c17, %c0_7] : memref<2x18x32xf32, #tpu.memory_space<vmem>>, vector<2x1x32xf32>
    tpu.vector_store %arg9[%c0_6, %c17, %c0_7], %3 {strides = array<i32>} : memref<2x18x32xf32, #tpu.memory_space<vmem>>, vector<2x1x32xf32>,
    %c0_8 = arith.constant 0 : index
    %c17_9 = arith.constant 17 : index
    %c0_10 = arith.constant 0 : index
    %5 = vector.load %arg10[%c0_8, %c17_9, %c0_10] : memref<2x18x32xf32, #tpu.memory_space<vmem>>, vector<2x1x32xf32>
    tpu.vector_store %arg10[%c0_8, %c17_9, %c0_10], %3 {strides = array<i32>} : memref<2x18x32xf32, #tpu.memory_space<vmem>>, vector<2x1x32xf32>,
    %c0_11 = arith.constant 0 : index
    %c0_12 = arith.constant 0 : index
    %c0_13 = arith.constant 0 : index
    %6 = vector.load %arg1[%c0_11, %c0_12, %c0_13] : memref<2x16x4xf32, #tpu.memory_space<vmem>>, vector<2x16x4xf32>
    %c0_14 = arith.constant 0 : index
    %c1 = arith.constant 1 : index
    %c0_15 = arith.constant 0 : index
    %7 = vector.load %arg9[%c0_14, %c1, %c0_15] : memref<2x18x32xf32, #tpu.memory_space<vmem>>, vector<2x16x4xf32>
    tpu.vector_store %arg9[%c0_14, %c1, %c0_15], %6 {strides = array<i32>} : memref<2x18x32xf32, #tpu.memory_space<vmem>>, vector<2x16x4xf32>,
    %c0_16 = arith.constant 0 : index
    %c0_17 = arith.constant 0 : index
    %c0_18 = arith.constant 0 : index
    %8 = vector.load %arg9[%c0_16, %c0_17, %c0_18] : memref<2x18x32xf32, #tpu.memory_space<vmem>>, vector<2x16x4xf32>
    %9 = vector.shape_cast %8 : vector<2x16x4xf32> to vector<32x4xf32>
    %10 = arith.truncf %9 : vector<32x4xf32> to vector<32x4xbf16>
    %c0_19 = arith.constant 0 : index
    %c0_20 = arith.constant 0 : index
    %c0_21 = arith.constant 0 : index
    %11 = vector.load %arg2[%c0_19, %c0_20, %c0_21] : memref<3x4x32xbf16, #tpu.memory_space<vmem>>, vector<1x4x32xbf16>
    %12 = vector.shape_cast %11 : vector<1x4x32xbf16> to vector<4x32xbf16>
    %cst_22 = arith.constant dense<0.000000e+00> : vector<32x32xf32>
    %13 = tpu.matmul %10, %12, %cst_22 {dimension_numbers = #tpu.dot_dimension_numbers<[1], [0], [0], [1], [0, 0, 1, 1], [], []>} : vector<32x4xbf16>, vector<4x32xbf16>, vector<32x32xf32> -> vector<32x32xf32>
    %c0_23 = arith.constant 0 : index
    %c1_24 = arith.constant 1 : index
    %c0_25 = arith.constant 0 : index
    %14 = vector.load %arg9[%c0_23, %c1_24, %c0_25] : memref<2x18x32xf32, #tpu.memory_space<vmem>>, vector<2x16x4xf32>
    %15 = vector.shape_cast %14 : vector<2x16x4xf32> to vector<32x4xf32>
    %16 = arith.truncf %15 : vector<32x4xf32> to vector<32x4xbf16>
    %c1_26 = arith.constant 1 : index
    %c0_27 = arith.constant 0 : index
    %c0_28 = arith.constant 0 : index
    %17 = vector.load %arg2[%c1_26, %c0_27, %c0_28] : memref<3x4x32xbf16, #tpu.memory_space<vmem>>, vector<1x4x32xbf16>
    %18 = vector.shape_cast %17 : vector<1x4x32xbf16> to vector<4x32xbf16>
    %cst_29 = arith.constant dense<0.000000e+00> : vector<32x32xf32>
    %19 = tpu.matmul %16, %18, %cst_29 {dimension_numbers = #tpu.dot_dimension_numbers<[1], [0], [0], [1], [0, 0, 1, 1], [], []>} : vector<32x4xbf16>, vector<4x32xbf16>, vector<32x32xf32> -> vector<32x32xf32>
    %20 = arith.addf %13, %19 : vector<32x32xf32>
    %c0_30 = arith.constant 0 : index
    %c2 = arith.constant 2 : index
    %c0_31 = arith.constant 0 : index
    %21 = vector.load %arg9[%c0_30, %c2, %c0_31] : memref<2x18x32xf32, #tpu.memory_space<vmem>>, vector<2x16x4xf32>
    %22 = vector.shape_cast %21 : vector<2x16x4xf32> to vector<32x4xf32>
    %23 = arith.truncf %22 : vector<32x4xf32> to vector<32x4xbf16>
    %c2_32 = arith.constant 2 : index
    %c0_33 = arith.constant 0 : index
    %c0_34 = arith.constant 0 : index
    %24 = vector.load %arg2[%c2_32, %c0_33, %c0_34] : memref<3x4x32xbf16, #tpu.memory_space<vmem>>, vector<1x4x32xbf16>
    %25 = vector.shape_cast %24 : vector<1x4x32xbf16> to vector<4x32xbf16>
    %cst_35 = arith.constant dense<0.000000e+00> : vector<32x32xf32>
    %26 = tpu.matmul %23, %25, %cst_35 {dimension_numbers = #tpu.dot_dimension_numbers<[1], [0], [0], [1], [0, 0, 1, 1], [], []>} : vector<32x4xbf16>, vector<4x32xbf16>, vector<32x32xf32> -> vector<32x32xf32>
    %27 = arith.addf %20, %26 : vector<32x32xf32>
    %c0_36 = arith.constant 0 : index
    %c0_37 = arith.constant 0 : index
    %28 = vector.load %arg3[%c0_36, %c0_37] : memref<1x32xf32, #tpu.memory_space<vmem>>, vector<1x32xf32>
    %29 = vector.broadcast %28 : vector<1x32xf32> to vector<32x32xf32>
    %30 = arith.addf %27, %29 : vector<32x32xf32>
    %cst_38 = arith.constant 0.000000e+00 : f32
    %31 = vector.broadcast %cst_38 : f32 to vector<32x32xf32>
    %32 = arith.maximumf %30, %31 : vector<32x32xf32>
    %33 = vector.shape_cast %32 : vector<32x32xf32> to vector<2x16x32xf32>
    %c0_39 = arith.constant 0 : index
    %c1_40 = arith.constant 1 : index
    %c0_41 = arith.constant 0 : index
    %34 = vector.load %arg10[%c0_39, %c1_40, %c0_41] : memref<2x18x32xf32, #tpu.memory_space<vmem>>, vector<2x16x32xf32>
    tpu.vector_store %arg10[%c0_39, %c1_40, %c0_41], %33 {strides = array<i32>} : memref<2x18x32xf32, #tpu.memory_space<vmem>>, vector<2x16x32xf32>,
    %c0_42 = arith.constant 0 : index
    %c0_43 = arith.constant 0 : index
    %c0_44 = arith.constant 0 : index
    %35 = vector.load %arg10[%c0_42, %c0_43, %c0_44] : memref<2x18x32xf32, #tpu.memory_space<vmem>>, vector<2x16x32xf32>
    %36 = vector.shape_cast %35 : vector<2x16x32xf32> to vector<32x32xf32>
    %37 = arith.truncf %36 : vector<32x32xf32> to vector<32x32xbf16>
    %c0_45 = arith.constant 0 : index
    %c0_46 = arith.constant 0 : index
    %c0_47 = arith.constant 0 : index
    %38 = vector.load %arg4[%c0_45, %c0_46, %c0_47] : memref<3x32x32xbf16, #tpu.memory_space<vmem>>, vector<1x32x32xbf16>
    %39 = vector.shape_cast %38 : vector<1x32x32xbf16> to vector<32x32xbf16>
    %cst_48 = arith.constant dense<0.000000e+00> : vector<32x32xf32>
    %40 = tpu.matmul %37, %39, %cst_48 {dimension_numbers = #tpu.dot_dimension_numbers<[1], [0], [0], [1], [0, 0, 1, 1], [], []>} : vector<32x32xbf16>, vector<32x32xbf16>, vector<32x32xf32> -> vector<32x32xf32>
    %c0_49 = arith.constant 0 : index
    %c1_50 = arith.constant 1 : index
    %c0_51 = arith.constant 0 : index
    %41 = vector.load %arg10[%c0_49, %c1_50, %c0_51] : memref<2x18x32xf32, #tpu.memory_space<vmem>>, vector<2x16x32xf32>
    %42 = vector.shape_cast %41 : vector<2x16x32xf32> to vector<32x32xf32>
    %43 = arith.truncf %42 : vector<32x32xf32> to vector<32x32xbf16>
    %c1_52 = arith.constant 1 : index
    %c0_53 = arith.constant 0 : index
    %c0_54 = arith.constant 0 : index
    %44 = vector.load %arg4[%c1_52, %c0_53, %c0_54] : memref<3x32x32xbf16, #tpu.memory_space<vmem>>, vector<1x32x32xbf16>
    %45 = vector.shape_cast %44 : vector<1x32x32xbf16> to vector<32x32xbf16>
    %cst_55 = arith.constant dense<0.000000e+00> : vector<32x32xf32>
    %46 = tpu.matmul %43, %45, %cst_55 {dimension_numbers = #tpu.dot_dimension_numbers<[1], [0], [0], [1], [0, 0, 1, 1], [], []>} : vector<32x32xbf16>, vector<32x32xbf16>, vector<32x32xf32> -> vector<32x32xf32>
    %47 = arith.addf %40, %46 : vector<32x32xf32>
    %c0_56 = arith.constant 0 : index
    %c2_57 = arith.constant 2 : index
    %c0_58 = arith.constant 0 : index
    %48 = vector.load %arg10[%c0_56, %c2_57, %c0_58] : memref<2x18x32xf32, #tpu.memory_space<vmem>>, vector<2x16x32xf32>
    %49 = vector.shape_cast %48 : vector<2x16x32xf32> to vector<32x32xf32>
    %50 = arith.truncf %49 : vector<32x32xf32> to vector<32x32xbf16>
    %c2_59 = arith.constant 2 : index
    %c0_60 = arith.constant 0 : index
    %c0_61 = arith.constant 0 : index
    %51 = vector.load %arg4[%c2_59, %c0_60, %c0_61] : memref<3x32x32xbf16, #tpu.memory_space<vmem>>, vector<1x32x32xbf16>
    %52 = vector.shape_cast %51 : vector<1x32x32xbf16> to vector<32x32xbf16>
    %cst_62 = arith.constant dense<0.000000e+00> : vector<32x32xf32>
    %53 = tpu.matmul %50, %52, %cst_62 {dimension_numbers = #tpu.dot_dimension_numbers<[1], [0], [0], [1], [0, 0, 1, 1], [], []>} : vector<32x32xbf16>, vector<32x32xbf16>, vector<32x32xf32> -> vector<32x32xf32>
    %54 = arith.addf %47, %53 : vector<32x32xf32>
    %c0_63 = arith.constant 0 : index
    %c0_64 = arith.constant 0 : index
    %55 = vector.load %arg5[%c0_63, %c0_64] : memref<1x32xf32, #tpu.memory_space<vmem>>, vector<1x32xf32>
    %56 = vector.broadcast %55 : vector<1x32xf32> to vector<32x32xf32>
    %57 = arith.addf %54, %56 : vector<32x32xf32>
    %cst_65 = arith.constant 0.000000e+00 : f32
    %58 = vector.broadcast %cst_65 : f32 to vector<32x32xf32>
    %59 = arith.maximumf %57, %58 : vector<32x32xf32>
    %60 = vector.shape_cast %59 : vector<32x32xf32> to vector<2x16x32xf32>
    %c0_66 = arith.constant 0 : index
    %c1_67 = arith.constant 1 : index
    %c0_68 = arith.constant 0 : index
    %61 = vector.load %arg9[%c0_66, %c1_67, %c0_68] : memref<2x18x32xf32, #tpu.memory_space<vmem>>, vector<2x16x32xf32>
    tpu.vector_store %arg9[%c0_66, %c1_67, %c0_68], %60 {strides = array<i32>} : memref<2x18x32xf32, #tpu.memory_space<vmem>>, vector<2x16x32xf32>,
    %c0_69 = arith.constant 0 : index
    %c0_70 = arith.constant 0 : index
    %c0_71 = arith.constant 0 : index
    %62 = vector.load %arg9[%c0_69, %c0_70, %c0_71] : memref<2x18x32xf32, #tpu.memory_space<vmem>>, vector<2x16x32xf32>
    %63 = vector.shape_cast %62 : vector<2x16x32xf32> to vector<32x32xf32>
    %64 = arith.truncf %63 : vector<32x32xf32> to vector<32x32xbf16>
    %c0_72 = arith.constant 0 : index
    %c0_73 = arith.constant 0 : index
    %c0_74 = arith.constant 0 : index
    %65 = vector.load %arg6[%c0_72, %c0_73, %c0_74] : memref<3x32x8xbf16, #tpu.memory_space<vmem>>, vector<1x32x8xbf16>
    %66 = vector.shape_cast %65 : vector<1x32x8xbf16> to vector<32x8xbf16>
    %cst_75 = arith.constant dense<0.000000e+00> : vector<32x8xf32>
    %67 = tpu.matmul %64, %66, %cst_75 {dimension_numbers = #tpu.dot_dimension_numbers<[1], [0], [0], [1], [0, 0, 1, 1], [], []>} : vector<32x32xbf16>, vector<32x8xbf16>, vector<32x8xf32> -> vector<32x8xf32>
    %c0_76 = arith.constant 0 : index
    %c1_77 = arith.constant 1 : index
    %c0_78 = arith.constant 0 : index
    %68 = vector.load %arg9[%c0_76, %c1_77, %c0_78] : memref<2x18x32xf32, #tpu.memory_space<vmem>>, vector<2x16x32xf32>
    %69 = vector.shape_cast %68 : vector<2x16x32xf32> to vector<32x32xf32>
    %70 = arith.truncf %69 : vector<32x32xf32> to vector<32x32xbf16>
    %c1_79 = arith.constant 1 : index
    %c0_80 = arith.constant 0 : index
    %c0_81 = arith.constant 0 : index
    %71 = vector.load %arg6[%c1_79, %c0_80, %c0_81] : memref<3x32x8xbf16, #tpu.memory_space<vmem>>, vector<1x32x8xbf16>
    %72 = vector.shape_cast %71 : vector<1x32x8xbf16> to vector<32x8xbf16>
    %cst_82 = arith.constant dense<0.000000e+00> : vector<32x8xf32>
    %73 = tpu.matmul %70, %72, %cst_82 {dimension_numbers = #tpu.dot_dimension_numbers<[1], [0], [0], [1], [0, 0, 1, 1], [], []>} : vector<32x32xbf16>, vector<32x8xbf16>, vector<32x8xf32> -> vector<32x8xf32>
    %74 = arith.addf %67, %73 : vector<32x8xf32>
    %c0_83 = arith.constant 0 : index
    %c2_84 = arith.constant 2 : index
    %c0_85 = arith.constant 0 : index
    %75 = vector.load %arg9[%c0_83, %c2_84, %c0_85] : memref<2x18x32xf32, #tpu.memory_space<vmem>>, vector<2x16x32xf32>
    %76 = vector.shape_cast %75 : vector<2x16x32xf32> to vector<32x32xf32>
    %77 = arith.truncf %76 : vector<32x32xf32> to vector<32x32xbf16>
    %c2_86 = arith.constant 2 : index
    %c0_87 = arith.constant 0 : index
    %c0_88 = arith.constant 0 : index
    %78 = vector.load %arg6[%c2_86, %c0_87, %c0_88] : memref<3x32x8xbf16, #tpu.memory_space<vmem>>, vector<1x32x8xbf16>
    %79 = vector.shape_cast %78 : vector<1x32x8xbf16> to vector<32x8xbf16>
    %cst_89 = arith.constant dense<0.000000e+00> : vector<32x8xf32>
    %80 = tpu.matmul %77, %79, %cst_89 {dimension_numbers = #tpu.dot_dimension_numbers<[1], [0], [0], [1], [0, 0, 1, 1], [], []>} : vector<32x32xbf16>, vector<32x8xbf16>, vector<32x8xf32> -> vector<32x8xf32>
    %81 = arith.addf %74, %80 : vector<32x8xf32>
    %c0_90 = arith.constant 0 : index
    %c0_91 = arith.constant 0 : index
    %82 = vector.load %arg7[%c0_90, %c0_91] : memref<1x8xf32, #tpu.memory_space<vmem>>, vector<1x8xf32>
    %83 = vector.broadcast %82 : vector<1x8xf32> to vector<32x8xf32>
    %84 = arith.addf %81, %83 : vector<32x8xf32>
    %85 = vector.shape_cast %84 : vector<32x8xf32> to vector<2x16x8xf32>
    %c0_92 = arith.constant 0 : index
    %c0_93 = arith.constant 0 : index
    %c0_94 = arith.constant 0 : index
    %86 = vector.load %arg8[%c0_92, %c0_93, %c0_94] : memref<2x16x8xf32, #tpu.memory_space<vmem>>, vector<2x16x8xf32>
    tpu.vector_store %arg8[%c0_92, %c0_93, %c0_94], %85 {strides = array<i32>} : memref<2x16x8xf32, #tpu.memory_space<vmem>>, vector<2x16x8xf32>,
    return
  }
  func.func @transform_0(%arg0: i32) -> (i32, i32, i32) {
    %c0_i32 = arith.constant 0 : i32
    %c0_i32_0 = arith.constant 0 : i32
    %c0_i32_1 = arith.constant 0 : i32
    return %arg0, %c0_i32, %c0_i32_0 : i32, i32, i32
  }
  func.func @transform_1(%arg0: i32) -> (i32, i32, i32) {
    %c0_i32 = arith.constant 0 : i32
    %c0_i32_0 = arith.constant 0 : i32
    %c0_i32_1 = arith.constant 0 : i32
    %c0_i32_2 = arith.constant 0 : i32
    return %c0_i32, %c0_i32_0, %c0_i32_1 : i32, i32, i32
  }
  func.func @transform_2(%arg0: i32) -> (i32, i32) {
    %c0_i32 = arith.constant 0 : i32
    %c0_i32_0 = arith.constant 0 : i32
    %c0_i32_1 = arith.constant 0 : i32
    return %c0_i32, %c0_i32_0 : i32, i32
  }
  func.func @transform_3(%arg0: i32) -> (i32, i32, i32) {
    %c0_i32 = arith.constant 0 : i32
    %c0_i32_0 = arith.constant 0 : i32
    %c0_i32_1 = arith.constant 0 : i32
    %c0_i32_2 = arith.constant 0 : i32
    return %c0_i32, %c0_i32_0, %c0_i32_1 : i32, i32, i32
  }
  func.func @transform_4(%arg0: i32) -> (i32, i32) {
    %c0_i32 = arith.constant 0 : i32
    %c0_i32_0 = arith.constant 0 : i32
    %c0_i32_1 = arith.constant 0 : i32
    return %c0_i32, %c0_i32_0 : i32, i32
  }
  func.func @transform_5(%arg0: i32) -> (i32, i32, i32) {
    %c0_i32 = arith.constant 0 : i32
    %c0_i32_0 = arith.constant 0 : i32
    %c0_i32_1 = arith.constant 0 : i32
    %c0_i32_2 = arith.constant 0 : i32
    return %c0_i32, %c0_i32_0, %c0_i32_1 : i32, i32, i32
  }
  func.func @transform_6(%arg0: i32) -> (i32, i32) {
    %c0_i32 = arith.constant 0 : i32
    %c0_i32_0 = arith.constant 0 : i32
    %c0_i32_1 = arith.constant 0 : i32
    return %c0_i32, %c0_i32_0 : i32, i32
  }
  func.func @transform_7(%arg0: i32) -> (i32, i32, i32) {
    %c0_i32 = arith.constant 0 : i32
    %c0_i32_0 = arith.constant 0 : i32
    %c0_i32_1 = arith.constant 0 : i32
    return %arg0, %c0_i32, %c0_i32_0 : i32, i32, i32
  }
}

</mosaic_0001>

<llo_original>
// kernel: tpu_custom_call.1
$region0: #{tpu_custom_call.1}
  #allocation0 [shape = 'u32[]', space=smem, size = 0x4, offset = 0x4, fixed_abs, tag = 'smem constant byte address 0x4 - core index']
  #allocation1 [shape = 'u32[144,128]{1,0:T(1,128)}', space=vmem, size = 0x12000, scoped, tag = 'internal scratch']
  #allocation2 [shape = 'f32[2,18,32]{2,1,0:T(8,128)}', space=vmem, size = 0x6000, scoped, tag = 'scratch operand']
  #allocation3 [shape = 'f32[2,18,32]{2,1,0:T(8,128)}', space=vmem, size = 0x6000, scoped, tag = 'scratch operand']
  %s0 = inlined_call_operand.vmem [shape: f32[2,16,4], index: 0, kind: input, shape index: {}]
  %s1 = inlined_call_operand.vmem [shape: bf16[3,4,32], index: 1, kind: input, shape index: {}]
  %s2 = inlined_call_operand.vmem [shape: f32[1,32], index: 2, kind: input, shape index: {}]
  %s3 = inlined_call_operand.vmem [shape: bf16[3,32,32], index: 3, kind: input, shape index: {}]
  %s4 = inlined_call_operand.vmem [shape: f32[1,32], index: 4, kind: input, shape index: {}]
  %s5 = inlined_call_operand.vmem [shape: bf16[3,32,8], index: 5, kind: input, shape index: {}]
  %s6 = inlined_call_operand.vmem [shape: f32[1,8], index: 6, kind: input, shape index: {}]
  %s7 = inlined_call_operand.vmem [shape: f32[2,16,8], index: 7, kind: output, shape index: {}]
  %s8 = sld [smem:[#allocation0]]
  $region38: #{tpu_custom_call.1} parent=0
    _
  %s10 = ssub.s32 1, %s8
  %s11 = scalar_select 0, %s10, %s8
  // Predicated region
  $region2: #{tpu_custom_call.1} parent=0 // pred_check
    _
  $region3: #{tpu_custom_call.1} parent=0 // pred_check_branch
    %13 = sbr.rel (0) target = $region5
  $region4: #{tpu_custom_call.1} parent=0 // pred_region
    _
  $region5: #{tpu_custom_call.1} parent=0 // pred_fallthru
    _
  // Predicated region
  $region6: #{tpu_custom_call.1} parent=0 // pred_check
    _
  $region7: #{tpu_custom_call.1} parent=0 // pred_check_branch
    %15 = sbr.rel (0) target = $region9
  $region8: #{tpu_custom_call.1} parent=0 // pred_region
    _
  $region9: #{tpu_custom_call.1} parent=0 // pred_fallthru
    _
  // Predicated region
  $region10: #{tpu_custom_call.1} parent=0 // pred_check
    _
  $region11: #{tpu_custom_call.1} parent=0 // pred_check_branch
    %17 = sbr.rel (0) target = $region13
  $region12: #{tpu_custom_call.1} parent=0 // pred_region
    _
  $region13: #{tpu_custom_call.1} parent=0 // pred_fallthru
    _
  // Predicated region
  $region14: #{tpu_custom_call.1} parent=0 // pred_check
    _
  $region15: #{tpu_custom_call.1} parent=0 // pred_check_branch
    %19 = sbr.rel (0) target = $region17
  $region16: #{tpu_custom_call.1} parent=0 // pred_region
    _
  $region17: #{tpu_custom_call.1} parent=0 // pred_fallthru
    _
  // Predicated region
  $region18: #{tpu_custom_call.1} parent=0 // pred_check
    _
  $region19: #{tpu_custom_call.1} parent=0 // pred_check_branch
    %21 = sbr.rel (0) target = $region21
  $region20: #{tpu_custom_call.1} parent=0 // pred_region
    _
  $region21: #{tpu_custom_call.1} parent=0 // pred_fallthru
    _
  // Predicated region
  $region22: #{tpu_custom_call.1} parent=0 // pred_check
    _
  $region23: #{tpu_custom_call.1} parent=0 // pred_check_branch
    %23 = sbr.rel (0) target = $region25
  $region24: #{tpu_custom_call.1} parent=0 // pred_region
    _
  $region25: #{tpu_custom_call.1} parent=0 // pred_fallthru
    _
  // Predicated region
  $region26: #{tpu_custom_call.1} parent=0 // pred_check
    _
  $region27: #{tpu_custom_call.1} parent=0 // pred_check_branch
    %25 = sbr.rel (0) target = $region29
  $region28: #{tpu_custom_call.1} parent=0 // pred_region
    _
  $region29: #{tpu_custom_call.1} parent=0 // pred_fallthru
    _
  %vm27 = vcmask 253952
  %28 = vst.msk [vmem:[#allocation2] sm:$0x1] %vm27, 0.0
  %29 = vst.msk [vmem:[#allocation2 + $0x18] sm:$0x1] %vm27, 0.0
  %30 = vst.msk [vmem:[#allocation3] sm:$0x1] %vm27, 0.0
  %31 = vst.msk [vmem:[#allocation3 + $0x18] sm:$0x1] %vm27, 0.0
  %32 = vst.msk [vmem:[#allocation2 + $0x11] sm:$0x1] %vm27, 0.0
  %33 = vst.msk [vmem:[#allocation2 + $0x29] sm:$0x1] %vm27, 0.0
  %34 = vst.msk [vmem:[#allocation3 + $0x11] sm:$0x1] %vm27, 0.0
  %35 = vst.msk [vmem:[#allocation3 + $0x29] sm:$0x1] %vm27, 0.0
  %v36 = vld [vmem:[%s0] sm:$0xff]
  %v37 = vld [vmem:[%s0 + $0x8] sm:$0xff]
  %v38 = vld [vmem:[%s0 + $0x10] sm:$0xff]
  %v39 = vld [vmem:[%s0 + $0x18] sm:$0xff]
  %vm40 = vcmask 31744
  %41 = vst.msk [vmem:[#allocation2 + $0x1] sm:$0xff] %vm40, %v36
  %42 = vst.msk [vmem:[#allocation2 + $0x9] sm:$0xff] %vm40, %v37
  %43 = vst.msk [vmem:[#allocation2 + $0x19] sm:$0xff] %vm40, %v38
  %44 = vst.msk [vmem:[#allocation2 + $0x21] sm:$0xff] %vm40, %v39
  %v45 = vld [vmem:[#allocation2] sm:$0xff]
  %v46 = vld [vmem:[#allocation2 + $0x8] sm:$0xff]
  %v47 = vld [vmem:[#allocation2 + $0x18] sm:$0xff]
  %v48 = vld [vmem:[#allocation2 + $0x20] sm:$0xff]
  %v49 = vpack.c.bf16 %v46, %v45
  %v50 = vpack.c.bf16 %v48, %v47
  %v51 = vld [vmem:[%s1] sm:$0x3]
  %v52 = vld [vmem:[#allocation2 + $0x1] sm:$0xff]
  %v53 = vld [vmem:[#allocation2 + $0x9] sm:$0xff]
  %v54 = vld [vmem:[#allocation2 + $0x19] sm:$0xff]
  %v55 = vld [vmem:[#allocation2 + $0x21] sm:$0xff]
  %v56 = vpack.c.bf16 %v53, %v52
  %v57 = vpack.c.bf16 %v55, %v54
  %s58 = scalar_lea.vmem %s1, 2
  %v59 = vld [vmem:[%s58] sm:$0x3]
  %v61 = vsel %vm40, %v56, 0
  %v64 = vsel %vm40, %v57, 0
  %vm66 = vcmask 1041408
  %v68 = vsel %vm66, %v59, 0
  %70 = vmatprep.subr.bf16.mxu0 0
  %71 = vmatpush1.bf16.msra.mxu0 %v68
  %72 = vmatprep.subr.bf16.mxu0 0
  %73 = vmatpush1.bf16.msra.mxu0 0
  %74 = vmatprep.subr.bf16.mxu0 0
  %75 = vmatpush1.bf16.msra.mxu0 0
  %76 = vmatprep.subr.bf16.mxu0 0
  %77 = vmatpush1.bf16.msra.mxu0 0
  %78 = vmatprep.subr.bf16.mxu0 0
  %79 = vmatpush1.bf16.msra.mxu0 0
  %80 = vmatprep.subr.bf16.mxu0 0
  %81 = vmatpush1.bf16.msra.mxu0 0
  %82 = vmatprep.subr.bf16.mxu0 0
  %83 = vmatpush1.bf16.msra.mxu0 0
  %84 = vmatprep.subr.bf16.mxu0 0
  %85 = vmatpush1.bf16.msra.mxu0 0
  %86 = vmatprep.subr.bf16.mxu0 0
  %87 = vmatpush1.bf16.msra.mxu0 0
  %88 = vmatprep.subr.bf16.mxu0 0
  %89 = vmatpush1.bf16.msra.mxu0 0
  %90 = vmatprep.subr.bf16.mxu0 0
  %91 = vmatpush1.bf16.msra.mxu0 0
  %92 = vmatprep.subr.bf16.mxu0 0
  %93 = vmatpush1.bf16.msra.mxu0 0
  %94 = vmatprep.subr.bf16.mxu0 0
  %95 = vmatpush1.bf16.msra.mxu0 0
  %96 = vmatprep.subr.bf16.mxu0 0
  %97 = vmatpush1.bf16.msra.mxu0 0
  %98 = vmatprep.subr.bf16.mxu0 0
  %99 = vmatpush1.bf16.msra.mxu0 0
  %100 = vmatprep.subr.bf16.mxu0 0
  %101 = vmatpush1.bf16.msra.mxu0 0
  %102 = vmatprep.mubr.bf16.mxu0 0
  %103 = vmatmul.mubr.bf16.gmra.mrb[0].mxu0 %v61
  %v104 = vpop.f32.mrb[0].mxu0
  %v105 = vadd.f32 0.0, %v104
  %v106 = vpop.f32.mrb[0].mxu0
  %v107 = vpop.f32.mrb[0].mxu0
  %v108 = vadd.f32 0.0, %v107
  %v109 = vpop.f32.mrb[0].mxu0
  %110 = vmatprep.mubr.bf16.mxu0 0
  %111 = vmatmul.mubr.bf16.gmra.mrb[0].mxu0 %v64
  %v112 = vpop.f32.mrb[0].mxu0
  %v113 = vadd.f32 0.0, %v112
  %v114 = vpop.f32.mrb[0].mxu0
  %v115 = vpop.f32.mrb[0].mxu0
  %v116 = vadd.f32 0.0, %v115
  %v117 = vpop.f32.mrb[0].mxu0
  %118 = vdwg.mxu0
  %v120 = vsel %vm40, %v49, 0
  %v123 = vsel %vm40, %v50, 0
  %v126 = vsel %vm66, %v51, 0
  %128 = vmatprep.subr.bf16.mxu0 0
  %129 = vmatpush1.bf16.msra.mxu0 %v126
  %130 = vmatprep.subr.bf16.mxu0 0
  %131 = vmatpush1.bf16.msra.mxu0 0
  %132 = vmatprep.subr.bf16.mxu0 0
  %133 = vmatpush1.bf16.msra.mxu0 0
  %134 = vmatprep.subr.bf16.mxu0 0
  %135 = vmatpush1.bf16.msra.mxu0 0
  %136 = vmatprep.subr.bf16.mxu0 0
  %137 = vmatpush1.bf16.msra.mxu0 0
  %138 = vmatprep.subr.bf16.mxu0 0
  %139 = vmatpush1.bf16.msra.mxu0 0
  %140 = vmatprep.subr.bf16.mxu0 0
  %141 = vmatpush1.bf16.msra.mxu0 0
  %142 = vmatprep.subr.bf16.mxu0 0
  %143 = vmatpush1.bf16.msra.mxu0 0
  %144 = vmatprep.subr.bf16.mxu0 0
  %145 = vmatpush1.bf16.msra.mxu0 0
  %146 = vmatprep.subr.bf16.mxu0 0
  %147 = vmatpush1.bf16.msra.mxu0 0
  %148 = vmatprep.subr.bf16.mxu0 0
  %149 = vmatpush1.bf16.msra.mxu0 0
  %150 = vmatprep.subr.bf16.mxu0 0
  %151 = vmatpush1.bf16.msra.mxu0 0
  %152 = vmatprep.subr.bf16.mxu0 0
  %153 = vmatpush1.bf16.msra.mxu0 0
  %154 = vmatprep.subr.bf16.mxu0 0
  %155 = vmatpush1.bf16.msra.mxu0 0
  %156 = vmatprep.subr.bf16.mxu0 0
  %157 = vmatpush1.bf16.msra.mxu0 0
  %158 = vmatprep.subr.bf16.mxu0 0
  %159 = vmatpush1.bf16.msra.mxu0 0
  %160 = vmatprep.mubr.bf16.mxu0 0
  %161 = vmatmul.mubr.bf16.gmra.mrb[0].mxu0 %v120
  %v162 = vpop.f32.mrb[0].mxu0
  %v163 = vadd.f32 %v105, %v162
  %v164 = vpop.f32.mrb[0].mxu0
  %v165 = vpop.f32.mrb[0].mxu0
  %v166 = vadd.f32 %v108, %v165
  %v167 = vpop.f32.mrb[0].mxu0
  %168 = vmatprep.mubr.bf16.mxu0 0
  %169 = vmatmul.mubr.bf16.gmra.mrb[0].mxu0 %v123
  %v170 = vpop.f32.mrb[0].mxu0
  %v171 = vadd.f32 %v113, %v170
  %v172 = vpop.f32.mrb[0].mxu0
  %v173 = vpop.f32.mrb[0].mxu0
  %v174 = vadd.f32 %v116, %v173
  %v175 = vpop.f32.mrb[0].mxu0
  %176 = vdwg.mxu0
  %v177 = vld [vmem:[#allocation2 + $0x2] sm:$0xff]
  %v178 = vld [vmem:[#allocation2 + $0xa] sm:$0xff]
  %v179 = vld [vmem:[#allocation2 + $0x1a] sm:$0xff]
  %v180 = vld [vmem:[#allocation2 + $0x22] sm:$0xff]
  %v181 = vpack.c.bf16 %v178, %v177
  %v182 = vpack.c.bf16 %v180, %v179
  %s183 = scalar_lea.vmem %s1, 4
  %v184 = vld [vmem:[%s183] sm:$0x3]
  %v186 = vsel %vm40, %v181, 0
  %v189 = vsel %vm40, %v182, 0
  %v192 = vsel %vm66, %v184, 0
  %194 = vmatprep.subr.bf16.mxu0 0
  %195 = vmatpush1.bf16.msra.mxu0 %v192
  %196 = vmatprep.subr.bf16.mxu0 0
  %197 = vmatpush1.bf16.msra.mxu0 0
  %198 = vmatprep.subr.bf16.mxu0 0
  %199 = vmatpush1.bf16.msra.mxu0 0
  %200 = vmatprep.subr.bf16.mxu0 0
  %201 = vmatpush1.bf16.msra.mxu0 0
  %202 = vmatprep.subr.bf16.mxu0 0
  %203 = vmatpush1.bf16.msra.mxu0 0
  %204 = vmatprep.subr.bf16.mxu0 0
  %205 = vmatpush1.bf16.msra.mxu0 0
  %206 = vmatprep.subr.bf16.mxu0 0
  %207 = vmatpush1.bf16.msra.mxu0 0
  %208 = vmatprep.subr.bf16.mxu0 0
  %209 = vmatpush1.bf16.msra.mxu0 0
  %210 = vmatprep.subr.bf16.mxu0 0
  %211 = vmatpush1.bf16.msra.mxu0 0
  %212 = vmatprep.subr.bf16.mxu0 0
  %213 = vmatpush1.bf16.msra.mxu0 0
  %214 = vmatprep.subr.bf16.mxu0 0
  %215 = vmatpush1.bf16.msra.mxu0 0
  %216 = vmatprep.subr.bf16.mxu0 0
  %217 = vmatpush1.bf16.msra.mxu0 0
  %218 = vmatprep.subr.bf16.mxu0 0
  %219 = vmatpush1.bf16.msra.mxu0 0
  %220 = vmatprep.subr.bf16.mxu0 0
  %221 = vmatpush1.bf16.msra.mxu0 0
  %222 = vmatprep.subr.bf16.mxu0 0
  %223 = vmatpush1.bf16.msra.mxu0 0
  %224 = vmatprep.subr.bf16.mxu0 0
  %225 = vmatpush1.bf16.msra.mxu0 0
  %226 = vmatprep.mubr.bf16.mxu0 0
  %227 = vmatmul.mubr.bf16.gmra.mrb[0].mxu0 %v186
  %v228 = vpop.f32.mrb[0].mxu0
  %v229 = vadd.f32 0.0, %v228
  %v230 = vpop.f32.mrb[0].mxu0
  %v231 = vpop.f32.mrb[0].mxu0
  %v232 = vadd.f32 0.0, %v231
  %v233 = vpop.f32.mrb[0].mxu0
  %234 = vmatprep.mubr.bf16.mxu0 0
  %235 = vmatmul.mubr.bf16.gmra.mrb[0].mxu0 %v189
  %v236 = vpop.f32.mrb[0].mxu0
  %v237 = vadd.f32 0.0, %v236
  %v238 = vpop.f32.mrb[0].mxu0
  %v239 = vpop.f32.mrb[0].mxu0
  %v240 = vadd.f32 0.0, %v239
  %v241 = vpop.f32.mrb[0].mxu0
  %242 = vdwg.mxu0
  %v243 = vadd.f32 %v163, %v229
  %v244 = vadd.f32 %v166, %v232
  %v245 = vadd.f32 %v171, %v237
  %v246 = vadd.f32 %v174, %v240
  %v247 = vld [vmem:[%s2] sm:$0x1]
  %v249 = vlaneseq
  %v250 = vshrl.u32 %v249, 7
  %v251 = vsub.s32 0, %v250
  %v252 = vrot.slane %v247, %v251
  %v254 = vadd.f32 %v243, %v252
  %v255 = vadd.f32 %v244, %v252
  %v256 = vadd.f32 %v245, %v252
  %v257 = vadd.f32 %v246, %v252
  %v258 = vmax.f32 %v254, 0.0
  %v259 = vmax.f32 %v255, 0.0
  %v260 = vmax.f32 %v256, 0.0
  %v261 = vmax.f32 %v257, 0.0
  %vm262 = vcmask 261120
  %263 = vst.msk [vmem:[#allocation3 + $0x1] sm:$0xff] %vm262, %v258
  %264 = vst.msk [vmem:[#allocation3 + $0x9] sm:$0xff] %vm262, %v259
  %265 = vst.msk [vmem:[#allocation3 + $0x19] sm:$0xff] %vm262, %v260
  %266 = vst.msk [vmem:[#allocation3 + $0x21] sm:$0xff] %vm262, %v261
  %v267 = vld [vmem:[#allocation3] sm:$0xff]
  %v268 = vld [vmem:[#allocation3 + $0x8] sm:$0xff]
  %v269 = vld [vmem:[#allocation3 + $0x18] sm:$0xff]
  %v270 = vld [vmem:[#allocation3 + $0x20] sm:$0xff]
  %v271 = vpack.c.bf16 %v268, %v267
  %v272 = vpack.c.bf16 %v270, %v269
  %v273 = vld [vmem:[%s3] sm:$0xf]
  %v274 = vld [vmem:[%s3 + $0x4] sm:$0xf]
  %v275 = vld [vmem:[%s3 + $0x8] sm:$0xf]
  %v276 = vld [vmem:[%s3 + $0xc] sm:$0xf]
  %v277 = vld [vmem:[#allocation3 + $0x1] sm:$0xff]
  %v278 = vld [vmem:[#allocation3 + $0x9] sm:$0xff]
  %v279 = vld [vmem:[#allocation3 + $0x19] sm:$0xff]
  %v280 = vld [vmem:[#allocation3 + $0x21] sm:$0xff]
  %v281 = vpack.c.bf16 %v278, %v277
  %v282 = vpack.c.bf16 %v280, %v279
  %s283 = scalar_lea.vmem %s3, 16
  %v284 = vld [vmem:[%s283] sm:$0xf]
  %v285 = vld [vmem:[%s283 + $0x4] sm:$0xf]
  %v286 = vld [vmem:[%s283 + $0x8] sm:$0xf]
  %v287 = vld [vmem:[%s283 + $0xc] sm:$0xf]
  %v292 = vunpack.c.l.b16 %v284
  %v293 = vunpack.c.l.b16 %v285
  %v294 = vunpack.c.l.b16 %v286
  %v295 = vunpack.c.l.b16 %v287
  %v296 = vpack.c.b16 %v293, %v292
  %v297 = vpack.c.b16 %v295, %v294
  %v301 = vsel %vm262, %v281, 0
  %v304 = vsel %vm262, %v282, 0
  %306 = vmatprep.subr.bf16.mxu0 0
  %307 = vmatpush1.bf16.msra.mxu0 %v296
  %308 = vmatprep.subr.bf16.mxu0 0
  %309 = vmatpush1.bf16.msra.mxu0 %v297
  %310 = vmatprep.subr.bf16.mxu0 0
  %311 = vmatpush1.bf16.msra.mxu0 0
  %312 = vmatprep.subr.bf16.mxu0 0
  %313 = vmatpush1.bf16.msra.mxu0 0
  %314 = vmatprep.subr.bf16.mxu0 0
  %315 = vmatpush1.bf16.msra.mxu0 0
  %316 = vmatprep.subr.bf16.mxu0 0
  %317 = vmatpush1.bf16.msra.mxu0 0
  %318 = vmatprep.subr.bf16.mxu0 0
  %319 = vmatpush1.bf16.msra.mxu0 0
  %320 = vmatprep.subr.bf16.mxu0 0
  %321 = vmatpush1.bf16.msra.mxu0 0
  %322 = vmatprep.subr.bf16.mxu0 0
  %323 = vmatpush1.bf16.msra.mxu0 0
  %324 = vmatprep.subr.bf16.mxu0 0
  %325 = vmatpush1.bf16.msra.mxu0 0
  %326 = vmatprep.subr.bf16.mxu0 0
  %327 = vmatpush1.bf16.msra.mxu0 0
  %328 = vmatprep.subr.bf16.mxu0 0
  %329 = vmatpush1.bf16.msra.mxu0 0
  %330 = vmatprep.subr.bf16.mxu0 0
  %331 = vmatpush1.bf16.msra.mxu0 0
  %332 = vmatprep.subr.bf16.mxu0 0
  %333 = vmatpush1.bf16.msra.mxu0 0
  %334 = vmatprep.subr.bf16.mxu0 0
  %335 = vmatpush1.bf16.msra.mxu0 0
  %336 = vmatprep.subr.bf16.mxu0 0
  %337 = vmatpush1.bf16.msra.mxu0 0
  %338 = vmatprep.mubr.bf16.mxu0 0
  %339 = vmatmul.mubr.bf16.gmra.mrb[0].mxu0 %v301
  %v340 = vpop.f32.mrb[0].mxu0
  %v341 = vadd.f32 0.0, %v340
  %v342 = vpop.f32.mrb[0].mxu0
  %v343 = vpop.f32.mrb[0].mxu0
  %v344 = vadd.f32 0.0, %v343
  %v345 = vpop.f32.mrb[0].mxu0
  %346 = vmatprep.mubr.bf16.mxu0 0
  %347 = vmatmul.mubr.bf16.gmra.mrb[0].mxu0 %v304
  %v348 = vpop.f32.mrb[0].mxu0
  %v349 = vadd.f32 0.0, %v348
  %v350 = vpop.f32.mrb[0].mxu0
  %v351 = vpop.f32.mrb[0].mxu0
  %v352 = vadd.f32 0.0, %v351
  %v353 = vpop.f32.mrb[0].mxu0
  %354 = vdwg.mxu0
  %v359 = vunpack.c.l.b16 %v273
  %v360 = vunpack.c.l.b16 %v274
  %v361 = vunpack.c.l.b16 %v275
  %v362 = vunpack.c.l.b16 %v276
  %v363 = vpack.c.b16 %v360, %v359
  %v364 = vpack.c.b16 %v362, %v361
  %v368 = vsel %vm262, %v271, 0
  %v371 = vsel %vm262, %v272, 0
  %373 = vmatprep.subr.bf16.mxu0 0
  %374 = vmatpush1.bf16.msra.mxu0 %v363
  %375 = vmatprep.subr.bf16.mxu0 0
  %376 = vmatpush1.bf16.msra.mxu0 %v364
  %377 = vmatprep.subr.bf16.mxu0 0
  %378 = vmatpush1.bf16.msra.mxu0 0
  %379 = vmatprep.subr.bf16.mxu0 0
  %380 = vmatpush1.bf16.msra.mxu0 0
  %381 = vmatprep.subr.bf16.mxu0 0
  %382 = vmatpush1.bf16.msra.mxu0 0
  %383 = vmatprep.subr.bf16.mxu0 0
  %384 = vmatpush1.bf16.msra.mxu0 0
  %385 = vmatprep.subr.bf16.mxu0 0
  %386 = vmatpush1.bf16.msra.mxu0 0
  %387 = vmatprep.subr.bf16.mxu0 0
  %388 = vmatpush1.bf16.msra.mxu0 0
  %389 = vmatprep.subr.bf16.mxu0 0
  %390 = vmatpush1.bf16.msra.mxu0 0
  %391 = vmatprep.subr.bf16.mxu0 0
  %392 = vmatpush1.bf16.msra.mxu0 0
  %393 = vmatprep.subr.bf16.mxu0 0
  %394 = vmatpush1.bf16.msra.mxu0 0
  %395 = vmatprep.subr.bf16.mxu0 0
  %396 = vmatpush1.bf16.msra.mxu0 0
  %397 = vmatprep.subr.bf16.mxu0 0
  %398 = vmatpush1.bf16.msra.mxu0 0
  %399 = vmatprep.subr.bf16.mxu0 0
  %400 = vmatpush1.bf16.msra.mxu0 0
  %401 = vmatprep.subr.bf16.mxu0 0
  %402 = vmatpush1.bf16.msra.mxu0 0
  %403 = vmatprep.subr.bf16.mxu0 0
  %404 = vmatpush1.bf16.msra.mxu0 0
  %405 = vmatprep.mubr.bf16.mxu0 0
  %406 = vmatmul.mubr.bf16.gmra.mrb[0].mxu0 %v368
  %v407 = vpop.f32.mrb[0].mxu0
  %v408 = vadd.f32 %v341, %v407
  %v409 = vpop.f32.mrb[0].mxu0
  %v410 = vpop.f32.mrb[0].mxu0
  %v411 = vadd.f32 %v344, %v410
  %v412 = vpop.f32.mrb[0].mxu0
  %413 = vmatprep.mubr.bf16.mxu0 0
  %414 = vmatmul.mubr.bf16.gmra.mrb[0].mxu0 %v371
  %v415 = vpop.f32.mrb[0].mxu0
  %v416 = vadd.f32 %v349, %v415
  %v417 = vpop.f32.mrb[0].mxu0
  %v418 = vpop.f32.mrb[0].mxu0
  %v419 = vadd.f32 %v352, %v418
  %v420 = vpop.f32.mrb[0].mxu0
  %421 = vdwg.mxu0
  %v422 = vld [vmem:[#allocation3 + $0x2] sm:$0xff]
  %v423 = vld [vmem:[#allocation3 + $0xa] sm:$0xff]
  %v424 = vld [vmem:[#allocation3 + $0x1a] sm:$0xff]
  %v425 = vld [vmem:[#allocation3 + $0x22] sm:$0xff]
  %v426 = vpack.c.bf16 %v423, %v422
  %v427 = vpack.c.bf16 %v425, %v424
  %s428 = scalar_lea.vmem %s3, 32
  %v429 = vld [vmem:[%s428] sm:$0xf]
  %v430 = vld [vmem:[%s428 + $0x4] sm:$0xf]
  %v431 = vld [vmem:[%s428 + $0x8] sm:$0xf]
  %v432 = vld [vmem:[%s428 + $0xc] sm:$0xf]
  %v437 = vunpack.c.l.b16 %v429
  %v438 = vunpack.c.l.b16 %v430
  %v439 = vunpack.c.l.b16 %v431
  %v440 = vunpack.c.l.b16 %v432
  %v441 = vpack.c.b16 %v438, %v437
  %v442 = vpack.c.b16 %v440, %v439
  %v446 = vsel %vm262, %v426, 0
  %v449 = vsel %vm262, %v427, 0
  %451 = vmatprep.subr.bf16.mxu0 0
  %452 = vmatpush1.bf16.msra.mxu0 %v441
  %453 = vmatprep.subr.bf16.mxu0 0
  %454 = vmatpush1.bf16.msra.mxu0 %v442
  %455 = vmatprep.subr.bf16.mxu0 0
  %456 = vmatpush1.bf16.msra.mxu0 0
  %457 = vmatprep.subr.bf16.mxu0 0
  %458 = vmatpush1.bf16.msra.mxu0 0
  %459 = vmatprep.subr.bf16.mxu0 0
  %460 = vmatpush1.bf16.msra.mxu0 0
  %461 = vmatprep.subr.bf16.mxu0 0
  %462 = vmatpush1.bf16.msra.mxu0 0
  %463 = vmatprep.subr.bf16.mxu0 0
  %464 = vmatpush1.bf16.msra.mxu0 0
  %465 = vmatprep.subr.bf16.mxu0 0
  %466 = vmatpush1.bf16.msra.mxu0 0
  %467 = vmatprep.subr.bf16.mxu0 0
  %468 = vmatpush1.bf16.msra.mxu0 0
  %469 = vmatprep.subr.bf16.mxu0 0
  %470 = vmatpush1.bf16.msra.mxu0 0
  %471 = vmatprep.subr.bf16.mxu0 0
  %472 = vmatpush1.bf16.msra.mxu0 0
  %473 = vmatprep.subr.bf16.mxu0 0
  %474 = vmatpush1.bf16.msra.mxu0 0
  %475 = vmatprep.subr.bf16.mxu0 0
  %476 = vmatpush1.bf16.msra.mxu0 0
  %477 = vmatprep.subr.bf16.mxu0 0
  %478 = vmatpush1.bf16.msra.mxu0 0
  %479 = vmatprep.subr.bf16.mxu0 0
  %480 = vmatpush1.bf16.msra.mxu0 0
  %481 = vmatprep.subr.bf16.mxu0 0
  %482 = vmatpush1.bf16.msra.mxu0 0
  %483 = vmatprep.mubr.bf16.mxu0 0
  %484 = vmatmul.mubr.bf16.gmra.mrb[0].mxu0 %v446
  %v485 = vpop.f32.mrb[0].mxu0
  %v486 = vadd.f32 0.0, %v485
  %v487 = vpop.f32.mrb[0].mxu0
  %v488 = vpop.f32.mrb[0].mxu0
  %v489 = vadd.f32 0.0, %v488
  %v490 = vpop.f32.mrb[0].mxu0
  %491 = vmatprep.mubr.bf16.mxu0 0
  %492 = vmatmul.mubr.bf16.gmra.mrb[0].mxu0 %v449
  %v493 = vpop.f32.mrb[0].mxu0
  %v494 = vadd.f32 0.0, %v493
  %v495 = vpop.f32.mrb[0].mxu0
  %v496 = vpop.f32.mrb[0].mxu0
  %v497 = vadd.f32 0.0, %v496
  %v498 = vpop.f32.mrb[0].mxu0
  %499 = vdwg.mxu0
  %v500 = vadd.f32 %v408, %v486
  %v501 = vadd.f32 %v411, %v489
  %v502 = vadd.f32 %v416, %v494
  %v503 = vadd.f32 %v419, %v497
  %v504 = vld [vmem:[%s4] sm:$0x1]
  %v506 = vlaneseq
  %v507 = vshrl.u32 %v506, 7
  %v508 = vsub.s32 0, %v507
  %v509 = vrot.slane %v504, %v508
  %v511 = vadd.f32 %v500, %v509
  %v512 = vadd.f32 %v501, %v509
  %v513 = vadd.f32 %v502, %v509
  %v514 = vadd.f32 %v503, %v509
  %v515 = vmax.f32 %v511, 0.0
  %v516 = vmax.f32 %v512, 0.0
  %v517 = vmax.f32 %v513, 0.0
  %v518 = vmax.f32 %v514, 0.0
  %519 = vst.msk [vmem:[#allocation2 + $0x1] sm:$0xff] %vm262, %v515
  %520 = vst.msk [vmem:[#allocation2 + $0x9] sm:$0xff] %vm262, %v516
  %521 = vst.msk [vmem:[#allocation2 + $0x19] sm:$0xff] %vm262, %v517
  %522 = vst.msk [vmem:[#allocation2 + $0x21] sm:$0xff] %vm262, %v518
  %v523 = vld [vmem:[#allocation2] sm:$0xff]
  %v524 = vld [vmem:[#allocation2 + $0x8] sm:$0xff]
  %v525 = vld [vmem:[#allocation2 + $0x18] sm:$0xff]
  %v526 = vld [vmem:[#allocation2 + $0x20] sm:$0xff]
  %v527 = vpack.c.bf16 %v524, %v523
  %v528 = vpack.c.bf16 %v526, %v525
  %v529 = vld [vmem:[%s5] sm:$0xf]
  %v530 = vld [vmem:[%s5 + $0x4] sm:$0xf]
  %v531 = vld [vmem:[%s5 + $0x8] sm:$0xf]
  %v532 = vld [vmem:[%s5 + $0xc] sm:$0xf]
  %v533 = vld [vmem:[#allocation2 + $0x1] sm:$0xff]
  %v534 = vld [vmem:[#allocation2 + $0x9] sm:$0xff]
  %v535 = vld [vmem:[#allocation2 + $0x19] sm:$0xff]
  %v536 = vld [vmem:[#allocation2 + $0x21] sm:$0xff]
  %v537 = vpack.c.bf16 %v534, %v533
  %v538 = vpack.c.bf16 %v536, %v535
  %s539 = scalar_lea.vmem %s5, 16
  %v540 = vld [vmem:[%s539] sm:$0xf]
  %v541 = vld [vmem:[%s539 + $0x4] sm:$0xf]
  %v542 = vld [vmem:[%s539 + $0x8] sm:$0xf]
  %v543 = vld [vmem:[%s539 + $0xc] sm:$0xf]
  %v548 = vunpack.c.l.b16 %v540
  %v549 = vunpack.c.l.b16 %v541
  %v550 = vunpack.c.l.b16 %v542
  %v551 = vunpack.c.l.b16 %v543
  %v552 = vpack.c.b16 %v549, %v548
  %v553 = vpack.c.b16 %v551, %v550
  %v557 = vsel %vm262, %v537, 0
  %v560 = vsel %vm262, %v538, 0
  %562 = vmatprep.subr.bf16.mxu0 0
  %563 = vmatpush1.bf16.msra.mxu0 %v552
  %564 = vmatprep.subr.bf16.mxu0 0
  %565 = vmatpush1.bf16.msra.mxu0 %v553
  %566 = vmatprep.subr.bf16.mxu0 0
  %567 = vmatpush1.bf16.msra.mxu0 0
  %568 = vmatprep.subr.bf16.mxu0 0
  %569 = vmatpush1.bf16.msra.mxu0 0
  %570 = vmatprep.subr.bf16.mxu0 0
  %571 = vmatpush1.bf16.msra.mxu0 0
  %572 = vmatprep.subr.bf16.mxu0 0
  %573 = vmatpush1.bf16.msra.mxu0 0
  %574 = vmatprep.subr.bf16.mxu0 0
  %575 = vmatpush1.bf16.msra.mxu0 0
  %576 = vmatprep.subr.bf16.mxu0 0
  %577 = vmatpush1.bf16.msra.mxu0 0
  %578 = vmatprep.subr.bf16.mxu0 0
  %579 = vmatpush1.bf16.msra.mxu0 0
  %580 = vmatprep.subr.bf16.mxu0 0
  %581 = vmatpush1.bf16.msra.mxu0 0
  %582 = vmatprep.subr.bf16.mxu0 0
  %583 = vmatpush1.bf16.msra.mxu0 0
  %584 = vmatprep.subr.bf16.mxu0 0
  %585 = vmatpush1.bf16.msra.mxu0 0
  %586 = vmatprep.subr.bf16.mxu0 0
  %587 = vmatpush1.bf16.msra.mxu0 0
  %588 = vmatprep.subr.bf16.mxu0 0
  %589 = vmatpush1.bf16.msra.mxu0 0
  %590 = vmatprep.subr.bf16.mxu0 0
  %591 = vmatpush1.bf16.msra.mxu0 0
  %592 = vmatprep.subr.bf16.mxu0 0
  %593 = vmatpush1.bf16.msra.mxu0 0
  %594 = vmatprep.mubr.bf16.mxu0 0
  %595 = vmatmul.mubr.bf16.gmra.mrb[0].mxu0 %v557
  %v596 = vpop.f32.mrb[0].mxu0
  %v597 = vadd.f32 0.0, %v596
  %v598 = vpop.f32.mrb[0].mxu0
  %v599 = vpop.f32.mrb[0].mxu0
  %v600 = vadd.f32 0.0, %v599
  %v601 = vpop.f32.mrb[0].mxu0
  %602 = vmatprep.mubr.bf16.mxu0 0
  %603 = vmatmul.mubr.bf16.gmra.mrb[0].mxu0 %v560
  %v604 = vpop.f32.mrb[0].mxu0
  %v605 = vadd.f32 0.0, %v604
  %v606 = vpop.f32.mrb[0].mxu0
  %v607 = vpop.f32.mrb[0].mxu0
  %v608 = vadd.f32 0.0, %v607
  %v609 = vpop.f32.mrb[0].mxu0
  %610 = vdwg.mxu0
  %v615 = vunpack.c.l.b16 %v529
  %v616 = vunpack.c.l.b16 %v530
  %v617 = vunpack.c.l.b16 %v531
  %v618 = vunpack.c.l.b16 %v532
  %v619 = vpack.c.b16 %v616, %v615
  %v620 = vpack.c.b16 %v618, %v617
  %v624 = vsel %vm262, %v527, 0
  %v627 = vsel %vm262, %v528, 0
  %629 = vmatprep.subr.bf16.mxu0 0
  %630 = vmatpush1.bf16.msra.mxu0 %v619
  %631 = vmatprep.subr.bf16.mxu0 0
  %632 = vmatpush1.bf16.msra.mxu0 %v620
  %633 = vmatprep.subr.bf16.mxu0 0
  %634 = vmatpush1.bf16.msra.mxu0 0
  %635 = vmatprep.subr.bf16.mxu0 0
  %636 = vmatpush1.bf16.msra.mxu0 0
  %637 = vmatprep.subr.bf16.mxu0 0
  %638 = vmatpush1.bf16.msra.mxu0 0
  %639 = vmatprep.subr.bf16.mxu0 0
  %640 = vmatpush1.bf16.msra.mxu0 0
  %641 = vmatprep.subr.bf16.mxu0 0
  %642 = vmatpush1.bf16.msra.mxu0 0
  %643 = vmatprep.subr.bf16.mxu0 0
  %644 = vmatpush1.bf16.msra.mxu0 0
  %645 = vmatprep.subr.bf16.mxu0 0
  %646 = vmatpush1.bf16.msra.mxu0 0
  %647 = vmatprep.subr.bf16.mxu0 0
  %648 = vmatpush1.bf16.msra.mxu0 0
  %649 = vmatprep.subr.bf16.mxu0 0
  %650 = vmatpush1.bf16.msra.mxu0 0
  %651 = vmatprep.subr.bf16.mxu0 0
  %652 = vmatpush1.bf16.msra.mxu0 0
  %653 = vmatprep.subr.bf16.mxu0 0
  %654 = vmatpush1.bf16.msra.mxu0 0
  %655 = vmatprep.subr.bf16.mxu0 0
  %656 = vmatpush1.bf16.msra.mxu0 0
  %657 = vmatprep.subr.bf16.mxu0 0
  %658 = vmatpush1.bf16.msra.mxu0 0
  %659 = vmatprep.subr.bf16.mxu0 0
  %660 = vmatpush1.bf16.msra.mxu0 0
  %661 = vmatprep.mubr.bf16.mxu0 0
  %662 = vmatmul.mubr.bf16.gmra.mrb[0].mxu0 %v624
  %v663 = vpop.f32.mrb[0].mxu0
  %v664 = vadd.f32 %v597, %v663
  %v665 = vpop.f32.mrb[0].mxu0
  %v666 = vpop.f32.mrb[0].mxu0
  %v667 = vadd.f32 %v600, %v666
  %v668 = vpop.f32.mrb[0].mxu0
  %669 = vmatprep.mubr.bf16.mxu0 0
  %670 = vmatmul.mubr.bf16.gmra.mrb[0].mxu0 %v627
  %v671 = vpop.f32.mrb[0].mxu0
  %v672 = vadd.f32 %v605, %v671
  %v673 = vpop.f32.mrb[0].mxu0
  %v674 = vpop.f32.mrb[0].mxu0
  %v675 = vadd.f32 %v608, %v674
  %v676 = vpop.f32.mrb[0].mxu0
  %677 = vdwg.mxu0
  %v678 = vld [vmem:[#allocation2 + $0x2] sm:$0xff]
  %v679 = vld [vmem:[#allocation2 + $0xa] sm:$0xff]
  %v680 = vld [vmem:[#allocation2 + $0x1a] sm:$0xff]
  %v681 = vld [vmem:[#allocation2 + $0x22] sm:$0xff]
  %v682 = vpack.c.bf16 %v679, %v678
  %v683 = vpack.c.bf16 %v681, %v680
  %s684 = scalar_lea.vmem %s5, 32
  %v685 = vld [vmem:[%s684] sm:$0xf]
  %v686 = vld [vmem:[%s684 + $0x4] sm:$0xf]
  %v687 = vld [vmem:[%s684 + $0x8] sm:$0xf]
  %v688 = vld [vmem:[%s684 + $0xc] sm:$0xf]
  %v693 = vunpack.c.l.b16 %v685
  %v694 = vunpack.c.l.b16 %v686
  %v695 = vunpack.c.l.b16 %v687
  %v696 = vunpack.c.l.b16 %v688
  %v697 = vpack.c.b16 %v694, %v693
  %v698 = vpack.c.b16 %v696, %v695
  %v702 = vsel %vm262, %v682, 0
  %v705 = vsel %vm262, %v683, 0
  %707 = vmatprep.subr.bf16.mxu0 0
  %708 = vmatpush1.bf16.msra.mxu0 %v697
  %709 = vmatprep.subr.bf16.mxu0 0
  %710 = vmatpush1.bf16.msra.mxu0 %v698
  %711 = vmatprep.subr.bf16.mxu0 0
  %712 = vmatpush1.bf16.msra.mxu0 0
  %713 = vmatprep.subr.bf16.mxu0 0
  %714 = vmatpush1.bf16.msra.mxu0 0
  %715 = vmatprep.subr.bf16.mxu0 0
  %716 = vmatpush1.bf16.msra.mxu0 0
  %717 = vmatprep.subr.bf16.mxu0 0
  %718 = vmatpush1.bf16.msra.mxu0 0
  %719 = vmatprep.subr.bf16.mxu0 0
  %720 = vmatpush1.bf16.msra.mxu0 0
  %721 = vmatprep.subr.bf16.mxu0 0
  %722 = vmatpush1.bf16.msra.mxu0 0
  %723 = vmatprep.subr.bf16.mxu0 0
  %724 = vmatpush1.bf16.msra.mxu0 0
  %725 = vmatprep.subr.bf16.mxu0 0
  %726 = vmatpush1.bf16.msra.mxu0 0
  %727 = vmatprep.subr.bf16.mxu0 0
  %728 = vmatpush1.bf16.msra.mxu0 0
  %729 = vmatprep.subr.bf16.mxu0 0
  %730 = vmatpush1.bf16.msra.mxu0 0
  %731 = vmatprep.subr.bf16.mxu0 0
  %732 = vmatpush1.bf16.msra.mxu0 0
  %733 = vmatprep.subr.bf16.mxu0 0
  %734 = vmatpush1.bf16.msra.mxu0 0
  %735 = vmatprep.subr.bf16.mxu0 0
  %736 = vmatpush1.bf16.msra.mxu0 0
  %737 = vmatprep.subr.bf16.mxu0 0
  %738 = vmatpush1.bf16.msra.mxu0 0
  %739 = vmatprep.mubr.bf16.mxu0 0
  %740 = vmatmul.mubr.bf16.gmra.mrb[0].mxu0 %v702
  %v741 = vpop.f32.mrb[0].mxu0
  %v742 = vadd.f32 0.0, %v741
  %v743 = vpop.f32.mrb[0].mxu0
  %v744 = vpop.f32.mrb[0].mxu0
  %v745 = vadd.f32 0.0, %v744
  %v746 = vpop.f32.mrb[0].mxu0
  %747 = vmatprep.mubr.bf16.mxu0 0
  %748 = vmatmul.mubr.bf16.gmra.mrb[0].mxu0 %v705
  %v749 = vpop.f32.mrb[0].mxu0
  %v750 = vadd.f32 0.0, %v749
  %v751 = vpop.f32.mrb[0].mxu0
  %v752 = vpop.f32.mrb[0].mxu0
  %v753 = vadd.f32 0.0, %v752
  %v754 = vpop.f32.mrb[0].mxu0
  %755 = vdwg.mxu0
  %v756 = vadd.f32 %v664, %v742
  %v757 = vadd.f32 %v667, %v745
  %v758 = vadd.f32 %v672, %v750
  %v759 = vadd.f32 %v675, %v753
  %v760 = vld [vmem:[%s6] sm:$0x1]
  %v762 = vlaneseq
  %v763 = vshrl.u32 %v762, 7
  %v764 = vsub.s32 0, %v763
  %v765 = vrot.slane %v760, %v764
  %v767 = vadd.f32 %v756, %v765
  %v768 = vadd.f32 %v757, %v765
  %v769 = vadd.f32 %v758, %v765
  %v770 = vadd.f32 %v759, %v765
  %vm771 = vcmask 64512
  %772 = vst.msk [vmem:[%s7] sm:$0xff] %vm771, %v767
  %773 = vst.msk [vmem:[%s7 + $0x8] sm:$0xff] %vm771, %v768
  %774 = vst.msk [vmem:[%s7 + $0x10] sm:$0xff] %vm771, %v769
  %775 = vst.msk [vmem:[%s7 + $0x18] sm:$0xff] %vm771, %v770
  // Predicated region
  $region30: #{tpu_custom_call.1} parent=0 // pred_check
    _
  $region31: #{tpu_custom_call.1} parent=0 // pred_check_branch
    %777 = sbr.rel (0) target = $region33
  $region32: #{tpu_custom_call.1} parent=0 // pred_region
    _
  $region33: #{tpu_custom_call.1} parent=0 // pred_fallthru
    _
  // Predicated region
  $region34: #{tpu_custom_call.1} parent=0 // pred_check
    _
  $region35: #{tpu_custom_call.1} parent=0 // pred_check_branch
    %779 = sbr.rel (0) target = $region37
  $region36: #{tpu_custom_call.1} parent=0 // pred_region
    _
  $region37: #{tpu_custom_call.1} parent=0 // pred_fallthru
    _

</llo_original>
